<compile_context>
chip_gen: v6e
topology: v6e:2x2x1
jax: 0.10.0
libtpu: 0.0.40
codegen_flags: <defaults>
</compile_context>

<pallas_src>
import jax
import jax.numpy as jnp
from jax.experimental import pallas as pl
from jax.experimental.pallas import tpu as pltpu


# ----------------------------------------------------------------------------
# Pallas kernel
# ----------------------------------------------------------------------------
def make_kernel(*, kf, kt, cin, cout, has_preconv, add_residual, col_idx):
    pad_f = (kf - 1) // 2
    pad_t = (kt - 1) // 2

    def kernel(x_ref, pk_ref, fmask_ref, tmask_ref, o_ref):
        F = x_ref.shape[1]
        L = x_ref.shape[2]

        # One hoisted load of every per-channel constant (a few vregs); all later
        # uses slice the value, so no per-use 1-lane vld traffic in the body.
        pk = pk_ref[...]                                    # (cout, 1, P)
        fmask = fmask_ref[...]                              # (kf, F, 1)
        tmask = tmask_ref[...]                              # (kt, 1, L)

        def col(j):
            return pk[:, :, j:j + 1]                        # (cout, 1, 1)

        x_in = x_ref[...].astype(jnp.float32)               # (cin, F, L), single load

        # -------- optional 1x1 conv (BN1 folded) + ReLU  (inDim != outDim) ---
        if has_preconv:
            acc = col(col_idx["pre_b"])                     # (cout, 1, 1)
            for ci in range(cin):
                acc = acc + col(col_idx["pre_w"] + ci) * x_in[ci][None, :, :]
            x = jnp.maximum(acc, 0.0)                       # (cout, F, L)
        else:
            x = x_in                                        # (cout, F, L)

        # -------- depthwise frequency conv (kf x 1) + bias, SiLU, BN2 --------
        # Edge mask folded into the per-tap weight: wk is a tiny (cout,F,1)
        # value, so each off-center tap costs one full-slab FMA instead of two
        # multiplies + an FMA.
        acc = col(col_idx["fb"])                            # start with bias
        for k in range(kf):
            shift = pad_f - k                               # out[f] uses in[f-shift]
            if shift == 0:
                acc = acc + col(col_idx["fw"] + k) * x
            else:
                wk = col(col_idx["fw"] + k) * fmask[k][None, :, :]   # (cout, F, 1)
                acc = acc + wk * jnp.roll(x, shift, axis=1)
        y = acc
        y = y * jax.nn.sigmoid(y)                           # SiLU
        freq_out = y * col(col_idx["s2"]) + col(col_idx["b2"])       # BN2 (folded)

        # -------- frequency average pool -> (cout, 1, L) ----------------------
        p = jnp.mean(freq_out, axis=1, keepdims=True)

        # -------- depthwise time conv (1 x kt), no bias; SiLU -----------------
        acc_t = jnp.zeros((cout, 1, L), jnp.float32)
        for k in range(kt):
            shift = pad_t - k
            if shift == 0:
                acc_t = acc_t + col(col_idx["tw"] + k) * p
            else:
                wk = col(col_idx["tw"] + k) * tmask[k][None, :, :]   # (cout, 1, L)
                acc_t = acc_t + wk * jnp.roll(p, shift, axis=2)
        z = acc_t * jax.nn.sigmoid(acc_t)                   # SiLU (BN3 folded below)

        # -------- 1x1 identity conv (BN3 folded in) ---------------------------
        zo = col(col_idx["id_b"])                           # (cout, 1, 1)
        for ci in range(cout):
            zo = zo + col(col_idx["id_w"] + ci) * z[ci][None, :, :]

        # -------- broadcast add over frequency + residual + ReLU --------------
        out = zo + freq_out                                 # (cout,1,L)->(cout,F,L)
        if add_residual:
            out = out + x                                   # reuse already-loaded input
        o_ref[...] = jnp.maximum(out, 0.0).astype(o_ref.dtype)

    return kernel


# ----------------------------------------------------------------------------
# Wrapper helpers
# ----------------------------------------------------------------------------
def _vmem_capacity_bytes():
    """Physical per-core VMEM (generation-aware) with a conservative fallback."""
    try:
        return int(pltpu.get_tpu_info().vmem_capacity_bytes)
    except Exception:
        return 64 << 20          # v7x-sized fallback; safe on every generation


def _plan_lane_blocks(N, T, F, cin, cout, vmem_cap_bytes):
    """Pick the lane block (nb whole samples -> Lb = nb*T lanes).

    Maximizes Lb subject to a VMEM budget, prefers lane-dense blocks (>=512
    lanes -> unmasked stores) and >=2 grid steps (pipelining + v7x's 2 TCs).
    If the whole batch is narrower than one vreg (N*T < 128), pads the lane
    axis to 128 so stores stay unmasked.

    Returns (Lb, n_steps, L_grid) with L_grid = n_steps * Lb (>= N*T).
    """
    L_total = N * T
    if L_total < 128:
        return 128, 1, 128                                  # pad lanes up to one vreg row

    # f32-equivalent bytes per lane of the streamed buffers + in-kernel temps.
    bytes_per_lane = 4 * F * (3 * cin + 12 * cout)
    max_lanes = max(128, (vmem_cap_bytes // 2) // max(bytes_per_lane, 1))

    cands = []
    for nb in range(1, N + 1):
        if N % nb:
            continue
        Lb = nb * T
        if Lb % 128 != 0 and nb != N:
            continue                                        # lane-aligned or full axis
        cands.append((nb, Lb))
    feasible = [c for c in cands if c[1] <= max_lanes]
    if not feasible:
        feasible = [min(cands, key=lambda c: c[1])]         # smallest legal block

    def score(c):
        nb, Lb = c
        steps = N // nb
        return (Lb >= 512 and steps >= 2,                   # lane-dense AND multi-step
                Lb >= 512,                                   # lane-dense
                steps >= 2,                                   # pipelining / v7x megacore
                Lb)                                           # then biggest block
    nb, Lb = max(feasible, key=score)
    n_steps = N // nb
    return Lb, n_steps, n_steps * Lb


# ----------------------------------------------------------------------------
# Wrapper
# ----------------------------------------------------------------------------
def broadcasted_residual_pallas(x, params, *, kf=3, kt=3, stride=(1, 1)):
    assert stride == (1, 1)        # TODO(synk): strided freq conv not implemented.
    assert kf % 2 == 1 and kt % 2 == 1   # 'same' padding only for odd kernels
    N, cin, Fdim, Tdim = x.shape
    cout = params["id_w"].shape[0]
    has_preconv = cin != cout
    add_residual = (cin == cout) and stride == (1, 1)
    f32 = jnp.float32

    # ---- fold BatchNorm1 / BatchNorm3 into the adjacent 1x1 convs ------------
    id_w = params["id_w"].astype(f32) * params["s3"].astype(f32)[None, :]
    id_b = params["id_b"].astype(f32) + params["id_w"].astype(f32) @ params["b3"].astype(f32)
    if has_preconv:
        pre_w = params["s1"].astype(f32)[:, None] * params["pre_w"].astype(f32)
        pre_b = params["s1"].astype(f32) * params["pre_b"].astype(f32) + params["b1"].astype(f32)

    # ---- pack every per-channel vector into ONE (cout, 1, P) VMEM operand ----
    cols, col_idx = [], {}

    def push(name, vecs):
        col_idx[name] = len(cols)
        cols.extend(vecs)

    push("fb", [params["fb"].astype(f32)])
    push("s2", [params["s2"].astype(f32)])
    push("b2", [params["b2"].astype(f32)])
    push("id_b", [id_b])
    push("fw", [params["fw"].astype(f32)[:, k] for k in range(kf)])
    push("tw", [params["tw"].astype(f32)[:, k] for k in range(kt)])
    push("id_w", [id_w[:, c] for c in range(cout)])
    if has_preconv:
        push("pre_b", [pre_b])
        push("pre_w", [pre_w[:, c] for c in range(cin)])
    P = len(cols)
    pk = jnp.stack(cols, axis=1).reshape(cout, 1, P)

    # ---- lane-block planning ---------------------------------------------------
    vmem_cap = _vmem_capacity_bytes()
    Lb, n_steps, L_grid = _plan_lane_blocks(N, Tdim, Fdim, cin, cout, vmem_cap)
    L_total = N * Tdim

    # ---- per-tap zero-pad edge masks ------------------------------------------
    pad_f, pad_t = (kf - 1) // 2, (kt - 1) // 2
    fpos = jnp.arange(Fdim)
    fmask = jnp.stack(
        [((fpos + k - pad_f >= 0) & (fpos + k - pad_f < Fdim)).astype(f32)
         for k in range(kf)], axis=0)[:, :, None]                    # (kf, F, 1)
    # tmask built at block width; identical every step -> kept resident.
    lane = jnp.arange(Lb)
    tpos = lane % Tdim
    valid = lane < L_total                                           # False only on pad lanes
    tmask = jnp.stack(
        [((tpos + k - pad_t >= 0) & (tpos + k - pad_t < Tdim) & valid).astype(f32)
         for k in range(kt)], axis=0)[:, None, :]                    # (kt, 1, Lb)

    # ---- host relayout: NCHW -> (C, F, N*T); lane axis holds N*T (padded) ----
    x_r = jnp.transpose(x, (1, 2, 0, 3)).reshape(cin, Fdim, L_total)
    if L_grid > L_total:
        x_r = jnp.pad(x_r, ((0, 0), (0, 0), (0, L_grid - L_total)))

    kernel = make_kernel(kf=kf, kt=kt, cin=cin, cout=cout,
                         has_preconv=has_preconv, add_residual=add_residual,
                         col_idx=col_idx)

    # ---- VMEM limit from the true footprint, clamped per-generation ------------
    itemsize = jnp.dtype(x.dtype).itemsize
    x_bufs = 3 if n_steps >= 3 else 2                 # deeper buffering on long grids
    footprint = (x_bufs * cin * Fdim * Lb * itemsize
                 + 2 * cout * Fdim * Lb * itemsize
                 + 8 * cout * Fdim * Lb * 4           # in-kernel f32 temporaries
                 + 2 * (pk.size + fmask.size + tmask.size) * 4)
    vmem_limit = int(min(max(4 * footprint, 32 << 20), (3 * vmem_cap) // 4))

    if n_steps >= 3:
        x_spec = pl.BlockSpec((cin, Fdim, Lb), lambda g: (0, 0, g),
                              pipeline_mode=pl.Buffered(3))
    else:
        x_spec = pl.BlockSpec((cin, Fdim, Lb), lambda g: (0, 0, g))

    in_specs = [
        x_spec,
        pl.BlockSpec((cout, 1, P), lambda g: (0, 0, 0)),
        pl.BlockSpec((kf, Fdim, 1), lambda g: (0, 0, 0)),
        pl.BlockSpec((kt, 1, Lb), lambda g: (0, 0, 0)),
    ]
    out_spec = pl.BlockSpec((cout, Fdim, Lb), lambda g: (0, 0, g))

    out_flat = pl.pallas_call(
        kernel,
        out_shape=jax.ShapeDtypeStruct((cout, Fdim, L_grid), x.dtype),
        grid_spec=pltpu.PrefetchScalarGridSpec(
            num_scalar_prefetch=0,
            grid=(n_steps,),
            in_specs=in_specs,
            out_specs=out_spec,
        ),
        compiler_params=pltpu.CompilerParams(
            dimension_semantics=("parallel",),
            vmem_limit_bytes=vmem_limit,
        ),
    )(x_r, pk, fmask, tmask)

    # ---- back to NCHW (dropping any lane padding) ------------------------------
    out = out_flat[:, :, :L_total].reshape(cout, Fdim, N, Tdim)
    return jnp.transpose(out, (2, 0, 1, 3))


# ----------------------------------------------------------------------------
# Pure-JAX reference (mirrors the PyTorch forward, BatchNorm in inference mode)
# ----------------------------------------------------------------------------
def ref_forward(x, p, *, kf=3, kt=3, stride=(1, 1)):
    cin = x.shape[1]
    cout = p["id_w"].shape[0]
    has_preconv = cin != cout
    add_residual = (cin == cout) and stride == (1, 1)
    orig = x

    def bvec(v):
        return v[None, :, None, None]

    if has_preconv:
        x = jnp.einsum("oi,nift->noft", p["pre_w"], x) + bvec(p["pre_b"])
        x = x * bvec(p["s1"]) + bvec(p["b1"])
        x = jnp.maximum(x, 0.0)

    Fdim, Tdim = x.shape[2], x.shape[3]
    pad_f = (kf - 1) // 2
    xp = jnp.pad(x, ((0, 0), (0, 0), (pad_f, pad_f), (0, 0)))
    y = sum(p["fw"][None, :, k, None, None] * xp[:, :, k:k + Fdim, :]
            for k in range(kf))
    y = y + bvec(p["fb"])
    y = y * jax.nn.sigmoid(y)
    y = y * bvec(p["s2"]) + bvec(p["b2"])
    freq_out = y

    q = jnp.mean(y, axis=2, keepdims=True)
    pad_t = (kt - 1) // 2
    qp = jnp.pad(q, ((0, 0), (0, 0), (0, 0), (pad_t, pad_t)))
    z = sum(p["tw"][None, :, k, None, None] * qp[:, :, :, k:k + Tdim]
            for k in range(kt))
    z = z * jax.nn.sigmoid(z)
    z = z * bvec(p["s3"]) + bvec(p["b3"])
    z = jnp.einsum("oi,niht->noht", p["id_w"], z) + bvec(p["id_b"])

    out = z + freq_out
    if add_residual:
        out = out + orig
    return jnp.maximum(out, 0.0)


# ----------------------------------------------------------------------------
# Deterministic parameter init (BatchNorms expressed as (scale, bias) pairs)
# ----------------------------------------------------------------------------
def init_params(key, cin, cout, kf=3, kt=3):
    ks = jax.random.split(key, 16)

    def rn(k, shape, scale=0.5):
        return scale * jax.random.normal(k, shape, jnp.float32)

    p = {}
    if cin != cout:
        p["pre_w"] = rn(ks[0], (cout, cin))
        p["pre_b"] = rn(ks[1], (cout,), 0.1)
        p["s1"] = 1.0 + 0.1 * jax.random.normal(ks[2], (cout,), jnp.float32)
        p["b1"] = rn(ks[3], (cout,), 0.1)
    p["fw"] = rn(ks[4], (cout, kf))
    p["fb"] = rn(ks[5], (cout,), 0.1)
    p["s2"] = 1.0 + 0.1 * jax.random.normal(ks[6], (cout,), jnp.float32)
    p["b2"] = rn(ks[7], (cout,), 0.1)
    p["tw"] = rn(ks[8], (cout, kt))
    p["s3"] = 1.0 + 0.1 * jax.random.normal(ks[9], (cout,), jnp.float32)
    p["b3"] = rn(ks[10], (cout,), 0.1)
    p["id_w"] = rn(ks[11], (cout, cout))
    p["id_b"] = rn(ks[12], (cout,), 0.1)
    return p


# ----------------------------------------------------------------------------
if __name__ == "__main__":
    key = jax.random.PRNGKey(0)
    N, Fdim, Tdim = 2, 16, 16

    # Config A: inDim == outDim == 4  -> residual with original input.
    # Config B: inDim 4 -> outDim 8   -> extra 1x1 conv path, no residual.
    for cin, cout in [(4, 4), (4, 8)]:
        key, kp, kx = jax.random.split(key, 3)
        params = init_params(kp, cin, cout)
        x = jax.random.normal(kx, (N, cin, Fdim, Tdim), jnp.float32)

        out = broadcasted_residual_pallas(x, params)
        out = jax.block_until_ready(out)

        ref = ref_forward(x, params)
        assert out.shape == ref.shape == (N, cout, Fdim, Tdim)
        err = float(jnp.max(jnp.abs(out - ref)))
        tol = 1e-4 * max(1.0, float(jnp.max(jnp.abs(ref))))
        if err > tol:
            raise AssertionError(f"mismatch for cin={cin} cout={cout}: {err}")

    print("KERNEL_OK")
</pallas_src>

<mosaic_0001>
module attributes {stable_mosaic.version = 11 : i64} {
  func.func @kernel(%arg0: i32, %arg1: memref<4x16x128xf32, #tpu.memory_space<vmem>>, %arg2: memref<4x1x14xf32, #tpu.memory_space<vmem>>, %arg3: memref<3x16x1xf32, #tpu.memory_space<vmem>>, %arg4: memref<3x1x128xf32, #tpu.memory_space<vmem>>, %arg5: memref<4x16x128xf32, #tpu.memory_space<vmem>>) attributes {dimension_semantics = [#tpu.dimension_semantics<parallel>], iteration_bounds = array<i64: 1>, scalar_prefetch = 0 : i64, scratch_operands = 0 : i64, tpu.core_type = #tpu.core_type<tc>, window_params = [{transform_indices = @transform_0, window_bounds = array<i64: 4, 16, 128>}, {pipeline_mode = #tpu.pipeline_mode<synchronous>, transform_indices = @transform_1, window_bounds = array<i64: 4, 1, 14>}, {pipeline_mode = #tpu.pipeline_mode<synchronous>, transform_indices = @transform_2, window_bounds = array<i64: 3, 16, 1>}, {pipeline_mode = #tpu.pipeline_mode<synchronous>, transform_indices = @transform_3, window_bounds = array<i64: 3, 1, 128>}, {transform_indices = @transform_4, window_bounds = array<i64: 4, 16, 128>}]} {
    %c0 = arith.constant 0 : index
    %c0_0 = arith.constant 0 : index
    %c0_1 = arith.constant 0 : index
    %0 = vector.load %arg2[%c0, %c0_0, %c0_1] : memref<4x1x14xf32, #tpu.memory_space<vmem>>, vector<4x1x14xf32>
    %c0_2 = arith.constant 0 : index
    %c0_3 = arith.constant 0 : index
    %c0_4 = arith.constant 0 : index
    %1 = vector.load %arg3[%c0_2, %c0_3, %c0_4] : memref<3x16x1xf32, #tpu.memory_space<vmem>>, vector<3x16x1xf32>
    %c0_5 = arith.constant 0 : index
    %c0_6 = arith.constant 0 : index
    %c0_7 = arith.constant 0 : index
    %2 = vector.load %arg4[%c0_5, %c0_6, %c0_7] : memref<3x1x128xf32, #tpu.memory_space<vmem>>, vector<3x1x128xf32>
    %c0_8 = arith.constant 0 : index
    %c0_9 = arith.constant 0 : index
    %c0_10 = arith.constant 0 : index
    %3 = vector.load %arg1[%c0_8, %c0_9, %c0_10] : memref<4x16x128xf32, #tpu.memory_space<vmem>>, vector<4x16x128xf32>
    %4 = vector.extract_strided_slice %0 {offsets = [0, 0, 0], sizes = [4, 1, 1], strides = [1, 1, 1]} : vector<4x1x14xf32> to vector<4x1x1xf32>
    %5 = vector.extract_strided_slice %0 {offsets = [0, 0, 4], sizes = [4, 1, 1], strides = [1, 1, 1]} : vector<4x1x14xf32> to vector<4x1x1xf32>
    %6 = vector.extract_strided_slice %1 {offsets = [0, 0, 0], sizes = [1, 16, 1], strides = [1, 1, 1]} : vector<3x16x1xf32> to vector<1x16x1xf32>
    %7 = vector.shape_cast %6 : vector<1x16x1xf32> to vector<16x1xf32>
    %8 = vector.shape_cast %7 : vector<16x1xf32> to vector<1x16x1xf32>
    %9 = vector.broadcast %5 : vector<4x1x1xf32> to vector<4x16x1xf32>
    %10 = vector.broadcast %8 : vector<1x16x1xf32> to vector<4x16x1xf32>
    %11 = arith.mulf %9, %10 : vector<4x16x1xf32>
    %12 = vector.extract_strided_slice %3 {offsets = [0, 15, 0], sizes = [4, 1, 128], strides = [1, 1, 1]} : vector<4x16x128xf32> to vector<4x1x128xf32>
    %13 = vector.extract_strided_slice %3 {offsets = [0, 0, 0], sizes = [4, 15, 128], strides = [1, 1, 1]} : vector<4x16x128xf32> to vector<4x15x128xf32>
    %14 = tpu.concatenate %12, %13 in 1 : vector<4x1x128xf32>, vector<4x15x128xf32> -> vector<4x16x128xf32>
    %15 = vector.broadcast %11 : vector<4x16x1xf32> to vector<4x16x128xf32>
    %16 = arith.mulf %15, %14 : vector<4x16x128xf32>
    %17 = vector.broadcast %4 : vector<4x1x1xf32> to vector<4x16x128xf32>
    %18 = arith.addf %17, %16 : vector<4x16x128xf32>
    %19 = vector.extract_strided_slice %0 {offsets = [0, 0, 5], sizes = [4, 1, 1], strides = [1, 1, 1]} : vector<4x1x14xf32> to vector<4x1x1xf32>
    %20 = vector.broadcast %19 : vector<4x1x1xf32> to vector<4x16x128xf32>
    %21 = arith.mulf %20, %3 : vector<4x16x128xf32>
    %22 = arith.addf %18, %21 : vector<4x16x128xf32>
    %23 = vector.extract_strided_slice %0 {offsets = [0, 0, 6], sizes = [4, 1, 1], strides = [1, 1, 1]} : vector<4x1x14xf32> to vector<4x1x1xf32>
    %24 = vector.extract_strided_slice %1 {offsets = [2, 0, 0], sizes = [1, 16, 1], strides = [1, 1, 1]} : vector<3x16x1xf32> to vector<1x16x1xf32>
    %25 = vector.shape_cast %24 : vector<1x16x1xf32> to vector<16x1xf32>
    %26 = vector.shape_cast %25 : vector<16x1xf32> to vector<1x16x1xf32>
    %27 = vector.broadcast %23 : vector<4x1x1xf32> to vector<4x16x1xf32>
    %28 = vector.broadcast %26 : vector<1x16x1xf32> to vector<4x16x1xf32>
    %29 = arith.mulf %27, %28 : vector<4x16x1xf32>
    %30 = vector.extract_strided_slice %3 {offsets = [0, 1, 0], sizes = [4, 15, 128], strides = [1, 1, 1]} : vector<4x16x128xf32> to vector<4x15x128xf32>
    %31 = vector.extract_strided_slice %3 {offsets = [0, 0, 0], sizes = [4, 1, 128], strides = [1, 1, 1]} : vector<4x16x128xf32> to vector<4x1x128xf32>
    %32 = tpu.concatenate %30, %31 in 1 : vector<4x15x128xf32>, vector<4x1x128xf32> -> vector<4x16x128xf32>
    %33 = vector.broadcast %29 : vector<4x16x1xf32> to vector<4x16x128xf32>
    %34 = arith.mulf %33, %32 : vector<4x16x128xf32>
    %35 = arith.addf %22, %34 : vector<4x16x128xf32>
    %36 = arith.negf %35 : vector<4x16x128xf32>
    %37 = math.exp %36 : vector<4x16x128xf32>
    %cst = arith.constant 1.000000e+00 : f32
    %38 = vector.broadcast %cst : f32 to vector<4x16x128xf32>
    %39 = arith.addf %38, %37 : vector<4x16x128xf32>
    %40 = arith.divf %38, %39 : vector<4x16x128xf32>
    %41 = arith.mulf %35, %40 : vector<4x16x128xf32>
    %42 = vector.extract_strided_slice %0 {offsets = [0, 0, 1], sizes = [4, 1, 1], strides = [1, 1, 1]} : vector<4x1x14xf32> to vector<4x1x1xf32>
    %43 = vector.broadcast %42 : vector<4x1x1xf32> to vector<4x16x128xf32>
    %44 = arith.mulf %41, %43 : vector<4x16x128xf32>
    %45 = vector.extract_strided_slice %0 {offsets = [0, 0, 2], sizes = [4, 1, 1], strides = [1, 1, 1]} : vector<4x1x14xf32> to vector<4x1x1xf32>
    %46 = vector.broadcast %45 : vector<4x1x1xf32> to vector<4x16x128xf32>
    %47 = arith.addf %44, %46 : vector<4x16x128xf32>
    %cst_11 = arith.constant dense<0.000000e+00> : vector<4x128xf32>
    %48 = vector.multi_reduction <add>, %47, %cst_11 [1] : vector<4x16x128xf32> to vector<4x128xf32>
    %49 = vector.shape_cast %48 : vector<4x128xf32> to vector<4x1x128xf32>
    %cst_12 = arith.constant 1.600000e+01 : f32
    %50 = vector.broadcast %cst_12 : f32 to vector<4x1x128xf32>
    %51 = arith.divf %49, %50 : vector<4x1x128xf32>
    %cst_13 = arith.constant 0.000000e+00 : f32
    %52 = vector.broadcast %cst_13 : f32 to vector<4x1x128xf32>
    %53 = vector.extract_strided_slice %0 {offsets = [0, 0, 7], sizes = [4, 1, 1], strides = [1, 1, 1]} : vector<4x1x14xf32> to vector<4x1x1xf32>
    %54 = vector.extract_strided_slice %2 {offsets = [0, 0, 0], sizes = [1, 1, 128], strides = [1, 1, 1]} : vector<3x1x128xf32> to vector<1x1x128xf32>
    %55 = vector.shape_cast %54 : vector<1x1x128xf32> to vector<1x128xf32>
    %56 = vector.shape_cast %55 : vector<1x128xf32> to vector<1x1x128xf32>
    %57 = vector.broadcast %53 : vector<4x1x1xf32> to vector<4x1x128xf32>
    %58 = vector.broadcast %56 : vector<1x1x128xf32> to vector<4x1x128xf32>
    %59 = arith.mulf %57, %58 : vector<4x1x128xf32>
    %60 = vector.extract_strided_slice %51 {offsets = [0, 0, 127], sizes = [4, 1, 1], strides = [1, 1, 1]} : vector<4x1x128xf32> to vector<4x1x1xf32>
    %61 = vector.extract_strided_slice %51 {offsets = [0, 0, 0], sizes = [4, 1, 127], strides = [1, 1, 1]} : vector<4x1x128xf32> to vector<4x1x127xf32>
    %62 = tpu.concatenate %60, %61 in 2 : vector<4x1x1xf32>, vector<4x1x127xf32> -> vector<4x1x128xf32>
    %63 = arith.mulf %59, %62 : vector<4x1x128xf32>
    %64 = arith.addf %52, %63 : vector<4x1x128xf32>
    %65 = vector.extract_strided_slice %0 {offsets = [0, 0, 8], sizes = [4, 1, 1], strides = [1, 1, 1]} : vector<4x1x14xf32> to vector<4x1x1xf32>
    %66 = vector.broadcast %65 : vector<4x1x1xf32> to vector<4x1x128xf32>
    %67 = arith.mulf %66, %51 : vector<4x1x128xf32>
    %68 = arith.addf %64, %67 : vector<4x1x128xf32>
    %69 = vector.extract_strided_slice %0 {offsets = [0, 0, 9], sizes = [4, 1, 1], strides = [1, 1, 1]} : vector<4x1x14xf32> to vector<4x1x1xf32>
    %70 = vector.extract_strided_slice %2 {offsets = [2, 0, 0], sizes = [1, 1, 128], strides = [1, 1, 1]} : vector<3x1x128xf32> to vector<1x1x128xf32>
    %71 = vector.shape_cast %70 : vector<1x1x128xf32> to vector<1x128xf32>
    %72 = vector.shape_cast %71 : vector<1x128xf32> to vector<1x1x128xf32>
    %73 = vector.broadcast %69 : vector<4x1x1xf32> to vector<4x1x128xf32>
    %74 = vector.broadcast %72 : vector<1x1x128xf32> to vector<4x1x128xf32>
    %75 = arith.mulf %73, %74 : vector<4x1x128xf32>
    %76 = vector.extract_strided_slice %51 {offsets = [0, 0, 1], sizes = [4, 1, 127], strides = [1, 1, 1]} : vector<4x1x128xf32> to vector<4x1x127xf32>
    %77 = vector.extract_strided_slice %51 {offsets = [0, 0, 0], sizes = [4, 1, 1], strides = [1, 1, 1]} : vector<4x1x128xf32> to vector<4x1x1xf32>
    %78 = tpu.concatenate %76, %77 in 2 : vector<4x1x127xf32>, vector<4x1x1xf32> -> vector<4x1x128xf32>
    %79 = arith.mulf %75, %78 : vector<4x1x128xf32>
    %80 = arith.addf %68, %79 : vector<4x1x128xf32>
    %81 = arith.negf %80 : vector<4x1x128xf32>
    %82 = math.exp %81 : vector<4x1x128xf32>
    %cst_14 = arith.constant 1.000000e+00 : f32
    %83 = vector.broadcast %cst_14 : f32 to vector<4x1x128xf32>
    %84 = arith.addf %83, %82 : vector<4x1x128xf32>
    %85 = arith.divf %83, %84 : vector<4x1x128xf32>
    %86 = arith.mulf %80, %85 : vector<4x1x128xf32>
    %87 = vector.extract_strided_slice %0 {offsets = [0, 0, 3], sizes = [4, 1, 1], strides = [1, 1, 1]} : vector<4x1x14xf32> to vector<4x1x1xf32>
    %88 = vector.extract_strided_slice %0 {offsets = [0, 0, 10], sizes = [4, 1, 1], strides = [1, 1, 1]} : vector<4x1x14xf32> to vector<4x1x1xf32>
    %89 = vector.extract_strided_slice %86 {offsets = [0, 0, 0], sizes = [1, 1, 128], strides = [1, 1, 1]} : vector<4x1x128xf32> to vector<1x1x128xf32>
    %90 = vector.shape_cast %89 : vector<1x1x128xf32> to vector<1x128xf32>
    %91 = vector.shape_cast %90 : vector<1x128xf32> to vector<1x1x128xf32>
    %92 = vector.broadcast %88 : vector<4x1x1xf32> to vector<4x1x128xf32>
    %93 = vector.broadcast %91 : vector<1x1x128xf32> to vector<4x1x128xf32>
    %94 = arith.mulf %92, %93 : vector<4x1x128xf32>
    %95 = vector.broadcast %87 : vector<4x1x1xf32> to vector<4x1x128xf32>
    %96 = arith.addf %95, %94 : vector<4x1x128xf32>
    %97 = vector.extract_strided_slice %0 {offsets = [0, 0, 11], sizes = [4, 1, 1], strides = [1, 1, 1]} : vector<4x1x14xf32> to vector<4x1x1xf32>
    %98 = vector.extract_strided_slice %86 {offsets = [1, 0, 0], sizes = [1, 1, 128], strides = [1, 1, 1]} : vector<4x1x128xf32> to vector<1x1x128xf32>
    %99 = vector.shape_cast %98 : vector<1x1x128xf32> to vector<1x128xf32>
    %100 = vector.shape_cast %99 : vector<1x128xf32> to vector<1x1x128xf32>
    %101 = vector.broadcast %97 : vector<4x1x1xf32> to vector<4x1x128xf32>
    %102 = vector.broadcast %100 : vector<1x1x128xf32> to vector<4x1x128xf32>
    %103 = arith.mulf %101, %102 : vector<4x1x128xf32>
    %104 = arith.addf %96, %103 : vector<4x1x128xf32>
    %105 = vector.extract_strided_slice %0 {offsets = [0, 0, 12], sizes = [4, 1, 1], strides = [1, 1, 1]} : vector<4x1x14xf32> to vector<4x1x1xf32>
    %106 = vector.extract_strided_slice %86 {offsets = [2, 0, 0], sizes = [1, 1, 128], strides = [1, 1, 1]} : vector<4x1x128xf32> to vector<1x1x128xf32>
    %107 = vector.shape_cast %106 : vector<1x1x128xf32> to vector<1x128xf32>
    %108 = vector.shape_cast %107 : vector<1x128xf32> to vector<1x1x128xf32>
    %109 = vector.broadcast %105 : vector<4x1x1xf32> to vector<4x1x128xf32>
    %110 = vector.broadcast %108 : vector<1x1x128xf32> to vector<4x1x128xf32>
    %111 = arith.mulf %109, %110 : vector<4x1x128xf32>
    %112 = arith.addf %104, %111 : vector<4x1x128xf32>
    %113 = vector.extract_strided_slice %0 {offsets = [0, 0, 13], sizes = [4, 1, 1], strides = [1, 1, 1]} : vector<4x1x14xf32> to vector<4x1x1xf32>
    %114 = vector.extract_strided_slice %86 {offsets = [3, 0, 0], sizes = [1, 1, 128], strides = [1, 1, 1]} : vector<4x1x128xf32> to vector<1x1x128xf32>
    %115 = vector.shape_cast %114 : vector<1x1x128xf32> to vector<1x128xf32>
    %116 = vector.shape_cast %115 : vector<1x128xf32> to vector<1x1x128xf32>
    %117 = vector.broadcast %113 : vector<4x1x1xf32> to vector<4x1x128xf32>
    %118 = vector.broadcast %116 : vector<1x1x128xf32> to vector<4x1x128xf32>
    %119 = arith.mulf %117, %118 : vector<4x1x128xf32>
    %120 = arith.addf %112, %119 : vector<4x1x128xf32>
    %121 = vector.broadcast %120 : vector<4x1x128xf32> to vector<4x16x128xf32>
    %122 = arith.addf %121, %47 : vector<4x16x128xf32>
    %123 = arith.addf %122, %3 : vector<4x16x128xf32>
    %cst_15 = arith.constant 0.000000e+00 : f32
    %124 = vector.broadcast %cst_15 : f32 to vector<4x16x128xf32>
    %125 = arith.maximumf %123, %124 : vector<4x16x128xf32>
    %c0_16 = arith.constant 0 : index
    %c0_17 = arith.constant 0 : index
    %c0_18 = arith.constant 0 : index
    %126 = vector.load %arg5[%c0_16, %c0_17, %c0_18] : memref<4x16x128xf32, #tpu.memory_space<vmem>>, vector<4x16x128xf32>
    tpu.vector_store %arg5[%c0_16, %c0_17, %c0_18], %125 {strides = array<i32>} : memref<4x16x128xf32, #tpu.memory_space<vmem>>, vector<4x16x128xf32>,
    return
  }
  func.func @transform_0(%arg0: i32) -> (i32, i32, i32) {
    %c0_i32 = arith.constant 0 : i32
    %c0_i32_0 = arith.constant 0 : i32
    %c0_i32_1 = arith.constant 0 : i32
    return %c0_i32, %c0_i32_0, %arg0 : i32, i32, i32
  }
  func.func @transform_1(%arg0: i32) -> (i32, i32, i32) {
    %c0_i32 = arith.constant 0 : i32
    %c0_i32_0 = arith.constant 0 : i32
    %c0_i32_1 = arith.constant 0 : i32
    %c0_i32_2 = arith.constant 0 : i32
    return %c0_i32, %c0_i32_0, %c0_i32_1 : i32, i32, i32
  }
  func.func @transform_2(%arg0: i32) -> (i32, i32, i32) {
    %c0_i32 = arith.constant 0 : i32
    %c0_i32_0 = arith.constant 0 : i32
    %c0_i32_1 = arith.constant 0 : i32
    %c0_i32_2 = arith.constant 0 : i32
    return %c0_i32, %c0_i32_0, %c0_i32_1 : i32, i32, i32
  }
  func.func @transform_3(%arg0: i32) -> (i32, i32, i32) {
    %c0_i32 = arith.constant 0 : i32
    %c0_i32_0 = arith.constant 0 : i32
    %c0_i32_1 = arith.constant 0 : i32
    %c0_i32_2 = arith.constant 0 : i32
    return %c0_i32, %c0_i32_0, %c0_i32_1 : i32, i32, i32
  }
  func.func @transform_4(%arg0: i32) -> (i32, i32, i32) {
    %c0_i32 = arith.constant 0 : i32
    %c0_i32_0 = arith.constant 0 : i32
    %c0_i32_1 = arith.constant 0 : i32
    return %c0_i32, %c0_i32_0, %arg0 : i32, i32, i32
  }
}

</mosaic_0001>

<llo_original>
// kernel: tpu_custom_call.1
$region0: #{tpu_custom_call.1}
  #allocation0 [shape = 'u32[]', space=smem, size = 0x4, offset = 0x4, fixed_abs, tag = 'smem constant byte address 0x4 - core index']
  #allocation1 [shape = 'u32[144,128]{1,0:T(1,128)}', space=vmem, size = 0x12000, scoped, tag = 'internal scratch']
  %s0 = inlined_call_operand.hbm [shape: f32[4,16,128], index: 0, kind: input, shape index: {}]
  %s1 = inlined_call_operand.vmem [shape: f32[4,1,14], index: 1, kind: input, shape index: {}]
  %s2 = inlined_call_operand.vmem [shape: f32[3,16,1], index: 2, kind: input, shape index: {}]
  %s3 = inlined_call_operand.vmem [shape: f32[3,1,128], index: 3, kind: input, shape index: {}]
  %s4 = inlined_call_operand.hbm [shape: f32[4,16,128], index: 4, kind: output, shape index: {}]
  %s5 = sld [smem:[#allocation0]]
  $region30: #{tpu_custom_call.1} parent=0
    _
  %s7 = ssub.s32 1, %s5
  %s8 = scalar_select 0, %s7, %s5
  $region1: #{tpu_custom_call.1} parent=0
    #allocation2 [shape = 'u8[32768]{0}', space=vmem, size = 0x8000, scoped, tag = 'input window, operand 0, single buffered']
    #allocation3 [shape = 's32[1]{0}', space=sflag, size = 0x4, scoped, tag = 'scoped memory for tpu_custom_call.1']
    #allocation4 [shape = 's32[1]{0}', space=sflag, size = 0x4, scoped, tag = 'scoped memory for tpu_custom_call.1']
    #allocation5 [shape = 'u8[32768]{0}', space=vmem, size = 0x8000, scoped, tag = 'output window, operand 0, single buffered']
    %9 = vsyncpa [#allocation3], 0
    %10 = vsyncpa [#allocation4], 0
    // Predicated region
    $region2: #{tpu_custom_call.1} parent=1 // pred_check
      _
    $region3: #{tpu_custom_call.1} parent=1 // pred_check_branch
      %12 = sbr.rel (0) target = $region5
    $region4: #{tpu_custom_call.1} parent=1 // pred_region
      %s14 = ssub.s32 1024, 1024
      %15 = vsyncadd [#allocation3], %s14
      %s16 = sshll.u32 [#allocation2], 4
      %s17 = int_to_ptr.vmem [resolvable:$true] %s16
      %22 = dma.hbm_to_vmem [thread:$0]  %s0, 1024, %s17, [#allocation3], 128, 128, 8
    $region5: #{tpu_custom_call.1} parent=1 // pred_fallthru
      _
    // Predicated region
    $region6: #{tpu_custom_call.1} parent=1 // pred_check
      _
    $region7: #{tpu_custom_call.1} parent=1 // pred_check_branch
      %24 = sbr.rel (0) target = $region9
    $region8: #{tpu_custom_call.1} parent=1 // pred_region
      _
    $region9: #{tpu_custom_call.1} parent=1 // pred_fallthru
      _
    // Predicated region
    $region10: #{tpu_custom_call.1} parent=1 // pred_check
      _
    $region11: #{tpu_custom_call.1} parent=1 // pred_check_branch
      %26 = sbr.rel (0) target = $region13
    $region12: #{tpu_custom_call.1} parent=1 // pred_region
      _
    $region13: #{tpu_custom_call.1} parent=1 // pred_fallthru
      _
    // Predicated region
    $region14: #{tpu_custom_call.1} parent=1 // pred_check
      _
    $region15: #{tpu_custom_call.1} parent=1 // pred_check_branch
      %28 = sbr.rel (0) target = $region17
    $region16: #{tpu_custom_call.1} parent=1 // pred_region
      _
    $region17: #{tpu_custom_call.1} parent=1 // pred_fallthru
      _
    // Predicated region
    $region18: #{tpu_custom_call.1} parent=1 // pred_check
      _
    $region19: #{tpu_custom_call.1} parent=1 // pred_check_branch
      %30 = sbr.rel (0) target = $region21
    $region20: #{tpu_custom_call.1} parent=1 // pred_region
      %31 = dma.done [#allocation3], 1024
    $region21: #{tpu_custom_call.1} parent=1 // pred_fallthru
      _
    %v32 = vld [vmem:[%s1] sm:$0x1]
    %v33 = vld [vmem:[%s1 + $0x1] sm:$0x1]
    %v34 = vld [vmem:[%s1 + $0x2] sm:$0x1]
    %v35 = vld [vmem:[%s1 + $0x3] sm:$0x1]
    %v36 = vld [vmem:[%s2] sm:$0xff]
    %v37 = vld [vmem:[%s2 + $0x8] sm:$0xff]
    %v38 = vld [vmem:[%s2 + $0x20] sm:$0xff]
    %v39 = vld [vmem:[%s2 + $0x28] sm:$0xff]
    %v40 = vld [vmem:[%s3] sm:$0x1]
    %v41 = vld [vmem:[%s3 + $0x2] sm:$0x1]
    %v42 = vld [vmem:[#allocation2] sm:$0xff]
    %v43 = vld [vmem:[#allocation2 + $0x8] sm:$0xff]
    %v44 = vld [vmem:[#allocation2 + $0x10] sm:$0xff]
    %v45 = vld [vmem:[#allocation2 + $0x18] sm:$0xff]
    %v46 = vld [vmem:[#allocation2 + $0x20] sm:$0xff]
    %v47 = vld [vmem:[#allocation2 + $0x28] sm:$0xff]
    %v48 = vld [vmem:[#allocation2 + $0x30] sm:$0xff]
    %v49 = vld [vmem:[#allocation2 + $0x38] sm:$0xff]
    %v54 = vlaneseq
    %v55 = vshrl.u32 %v54, 7
    %v56 = vsub.s32 0, %v55
    %v57 = vrot.slane %v32, %v56
    %v58 = vlaneseq
    %v59 = vshrl.u32 %v58, 7
    %v60 = vsub.s32 0, %v59
    %v61 = vrot.slane %v33, %v60
    %v62 = vlaneseq
    %v63 = vshrl.u32 %v62, 7
    %v64 = vsub.s32 0, %v63
    %v65 = vrot.slane %v34, %v64
    %v66 = vlaneseq
    %v67 = vshrl.u32 %v66, 7
    %v68 = vsub.s32 0, %v67
    %v69 = vrot.slane %v35, %v68
    %76 = vrot.lane.b32.xlu0 %v36, 4
    %v77 = vpop.permute.xlu0 %76
    %78 = vrot.lane.b32.xlu0 %v37, 4
    %v79 = vpop.permute.xlu0 %78
    %v82 = vmul.f32 %v57, %v77
    %v83 = vmul.f32 %v57, %v79
    %v84 = vmul.f32 %v61, %v77
    %v85 = vmul.f32 %v61, %v79
    %v86 = vmul.f32 %v65, %v77
    %v87 = vmul.f32 %v65, %v79
    %v88 = vmul.f32 %v69, %v77
    %v89 = vmul.f32 %v69, %v79
    %v94 = vrot.slane %v43, 7
    %v95 = vrot.slane %v45, 7
    %v96 = vrot.slane %v47, 7
    %v97 = vrot.slane %v49, 7
    %vm106 = vcmask 1040384
    %v107 = vrot.slane %v42, 7
    %v108 = vsel %vm106, %v107, %v94
    %v109 = vrot.slane %v44, 7
    %v110 = vsel %vm106, %v109, %v95
    %v111 = vrot.slane %v46, 7
    %v112 = vsel %vm106, %v111, %v96
    %v113 = vrot.slane %v48, 7
    %v114 = vsel %vm106, %v113, %v97
    %v123 = vsel %vm106, %v94, %v107
    %v124 = vsel %vm106, %v95, %v109
    %v125 = vsel %vm106, %v96, %v111
    %v126 = vsel %vm106, %v97, %v113
    %128 = vset.pattern.permute.xlu0 4
    %129 = vperm.xlu0 %128, %v82
    %v130 = vpop.permute.xlu0 %129
    %133 = vset.pattern.permute.xlu0 4
    %134 = vperm.xlu0 %133, %v83
    %v135 = vpop.permute.xlu0 %134
    %138 = vset.pattern.permute.xlu0 4
    %139 = vperm.xlu0 %138, %v84
    %v140 = vpop.permute.xlu0 %139
    %143 = vset.pattern.permute.xlu0 4
    %144 = vperm.xlu0 %143, %v85
    %v145 = vpop.permute.xlu0 %144
    %148 = vset.pattern.permute.xlu0 4
    %149 = vperm.xlu0 %148, %v86
    %v150 = vpop.permute.xlu0 %149
    %153 = vset.pattern.permute.xlu0 4
    %154 = vperm.xlu0 %153, %v87
    %v155 = vpop.permute.xlu0 %154
    %158 = vset.pattern.permute.xlu0 4
    %159 = vperm.xlu0 %158, %v88
    %v160 = vpop.permute.xlu0 %159
    %163 = vset.pattern.permute.xlu0 4
    %164 = vperm.xlu0 %163, %v89
    %v165 = vpop.permute.xlu0 %164
    %v167 = vmul.f32 %v130, %v123
    %v168 = vmul.f32 %v135, %v108
    %v169 = vmul.f32 %v140, %v124
    %v170 = vmul.f32 %v145, %v110
    %v171 = vmul.f32 %v150, %v125
    %v172 = vmul.f32 %v155, %v112
    %v173 = vmul.f32 %v160, %v126
    %v174 = vmul.f32 %v165, %v114
    %175 = vset.pattern.permute.xlu0 0
    %176 = vperm.xlu0 %175, %v57
    %v177 = vpop.permute.xlu0 %176
    %179 = vset.pattern.permute.xlu0 0
    %180 = vperm.xlu0 %179, %v61
    %v181 = vpop.permute.xlu0 %180
    %183 = vset.pattern.permute.xlu0 0
    %184 = vperm.xlu0 %183, %v65
    %v185 = vpop.permute.xlu0 %184
    %187 = vset.pattern.permute.xlu0 0
    %188 = vperm.xlu0 %187, %v69
    %v189 = vpop.permute.xlu0 %188
    %v191 = vadd.f32 %v177, %v167
    %v192 = vadd.f32 %v177, %v168
    %v193 = vadd.f32 %v181, %v169
    %v194 = vadd.f32 %v181, %v170
    %v195 = vadd.f32 %v185, %v171
    %v196 = vadd.f32 %v185, %v172
    %v197 = vadd.f32 %v189, %v173
    %v198 = vadd.f32 %v189, %v174
    %199 = vset.pattern.permute.xlu0 5
    %200 = vperm.xlu0 %199, %v57
    %v201 = vpop.permute.xlu0 %200
    %203 = vset.pattern.permute.xlu0 5
    %204 = vperm.xlu0 %203, %v61
    %v205 = vpop.permute.xlu0 %204
    %207 = vset.pattern.permute.xlu0 5
    %208 = vperm.xlu0 %207, %v65
    %v209 = vpop.permute.xlu0 %208
    %211 = vset.pattern.permute.xlu0 5
    %212 = vperm.xlu0 %211, %v69
    %v213 = vpop.permute.xlu0 %212
    %v215 = vmul.f32 %v201, %v42
    %v216 = vmul.f32 %v201, %v43
    %v217 = vmul.f32 %v205, %v44
    %v218 = vmul.f32 %v205, %v45
    %v219 = vmul.f32 %v209, %v46
    %v220 = vmul.f32 %v209, %v47
    %v221 = vmul.f32 %v213, %v48
    %v222 = vmul.f32 %v213, %v49
    %v223 = vadd.f32 %v191, %v215
    %v224 = vadd.f32 %v192, %v216
    %v225 = vadd.f32 %v193, %v217
    %v226 = vadd.f32 %v194, %v218
    %v227 = vadd.f32 %v195, %v219
    %v228 = vadd.f32 %v196, %v220
    %v229 = vadd.f32 %v197, %v221
    %v230 = vadd.f32 %v198, %v222
    %233 = vrot.lane.b32.xlu0 %v38, 6
    %v234 = vpop.permute.xlu0 %233
    %235 = vrot.lane.b32.xlu0 %v39, 6
    %v236 = vpop.permute.xlu0 %235
    %v239 = vmul.f32 %v57, %v234
    %v240 = vmul.f32 %v57, %v236
    %v241 = vmul.f32 %v61, %v234
    %v242 = vmul.f32 %v61, %v236
    %v243 = vmul.f32 %v65, %v234
    %v244 = vmul.f32 %v65, %v236
    %v245 = vmul.f32 %v69, %v234
    %v246 = vmul.f32 %v69, %v236
    %vm247 = vcmask 1046528
    %v248 = vrot.slane %v42, 1
    %v249 = vrot.slane %v43, 1
    %v250 = vsel %vm247, %v248, %v249
    %v251 = vrot.slane %v44, 1
    %v252 = vrot.slane %v45, 1
    %v253 = vsel %vm247, %v251, %v252
    %v254 = vrot.slane %v46, 1
    %v255 = vrot.slane %v47, 1
    %v256 = vsel %vm247, %v254, %v255
    %v257 = vrot.slane %v48, 1
    %v258 = vrot.slane %v49, 1
    %v259 = vsel %vm247, %v257, %v258
    %v272 = vsel %vm247, %v249, %v248
    %v273 = vsel %vm247, %v252, %v251
    %v274 = vsel %vm247, %v255, %v254
    %v275 = vsel %vm247, %v258, %v257
    %277 = vset.pattern.permute.xlu0 6
    %278 = vperm.xlu0 %277, %v239
    %v279 = vpop.permute.xlu0 %278
    %282 = vset.pattern.permute.xlu0 6
    %283 = vperm.xlu0 %282, %v240
    %v284 = vpop.permute.xlu0 %283
    %287 = vset.pattern.permute.xlu0 6
    %288 = vperm.xlu0 %287, %v241
    %v289 = vpop.permute.xlu0 %288
    %292 = vset.pattern.permute.xlu0 6
    %293 = vperm.xlu0 %292, %v242
    %v294 = vpop.permute.xlu0 %293
    %297 = vset.pattern.permute.xlu0 6
    %298 = vperm.xlu0 %297, %v243
    %v299 = vpop.permute.xlu0 %298
    %302 = vset.pattern.permute.xlu0 6
    %303 = vperm.xlu0 %302, %v244
    %v304 = vpop.permute.xlu0 %303
    %307 = vset.pattern.permute.xlu0 6
    %308 = vperm.xlu0 %307, %v245
    %v309 = vpop.permute.xlu0 %308
    %312 = vset.pattern.permute.xlu0 6
    %313 = vperm.xlu0 %312, %v246
    %v314 = vpop.permute.xlu0 %313
    %v316 = vmul.f32 %v279, %v250
    %v317 = vmul.f32 %v284, %v272
    %v318 = vmul.f32 %v289, %v253
    %v319 = vmul.f32 %v294, %v273
    %v320 = vmul.f32 %v299, %v256
    %v321 = vmul.f32 %v304, %v274
    %v322 = vmul.f32 %v309, %v259
    %v323 = vmul.f32 %v314, %v275
    %v324 = vadd.f32 %v223, %v316
    %v325 = vadd.f32 %v224, %v317
    %v326 = vadd.f32 %v225, %v318
    %v327 = vadd.f32 %v226, %v319
    %v328 = vadd.f32 %v227, %v320
    %v329 = vadd.f32 %v228, %v321
    %v330 = vadd.f32 %v229, %v322
    %v331 = vadd.f32 %v230, %v323
    %v332 = vxor.u32 %v324, 2147483648
    %v333 = vxor.u32 %v325, 2147483648
    %v334 = vxor.u32 %v326, 2147483648
    %v335 = vxor.u32 %v327, 2147483648
    %v336 = vxor.u32 %v328, 2147483648
    %v337 = vxor.u32 %v329, 2147483648
    %v338 = vxor.u32 %v330, 2147483648
    %v339 = vxor.u32 %v331, 2147483648
    %v340 = vmul.f32 %v332, 1.442695
    %v341 = vpow.pop %v340
    %v342 = vmul.f32 %v333, 1.442695
    %v343 = vpow.pop %v342
    %v344 = vmul.f32 %v334, 1.442695
    %v345 = vpow.pop %v344
    %v346 = vmul.f32 %v335, 1.442695
    %v347 = vpow.pop %v346
    %v348 = vmul.f32 %v336, 1.442695
    %v349 = vpow.pop %v348
    %v350 = vmul.f32 %v337, 1.442695
    %v351 = vpow.pop %v350
    %v352 = vmul.f32 %v338, 1.442695
    %v353 = vpow.pop %v352
    %v354 = vmul.f32 %v339, 1.442695
    %v355 = vpow.pop %v354
    %v356 = vadd.f32 %v341, 1.0
    %v357 = vadd.f32 %v343, 1.0
    %v358 = vadd.f32 %v345, 1.0
    %v359 = vadd.f32 %v347, 1.0
    %v360 = vadd.f32 %v349, 1.0
    %v361 = vadd.f32 %v351, 1.0
    %v362 = vadd.f32 %v353, 1.0
    %v363 = vadd.f32 %v355, 1.0
    %v364 = vrcp.pop %v356
    %v365 = vmul.f32 1.0, %v364
    %v366 = vrcp.pop %v357
    %v367 = vmul.f32 1.0, %v366
    %v368 = vrcp.pop %v358
    %v369 = vmul.f32 1.0, %v368
    %v370 = vrcp.pop %v359
    %v371 = vmul.f32 1.0, %v370
    %v372 = vrcp.pop %v360
    %v373 = vmul.f32 1.0, %v372
    %v374 = vrcp.pop %v361
    %v375 = vmul.f32 1.0, %v374
    %v376 = vrcp.pop %v362
    %v377 = vmul.f32 1.0, %v376
    %v378 = vrcp.pop %v363
    %v379 = vmul.f32 1.0, %v378
    %v380 = vmul.f32 %v324, %v365
    %v381 = vmul.f32 %v325, %v367
    %v382 = vmul.f32 %v326, %v369
    %v383 = vmul.f32 %v327, %v371
    %v384 = vmul.f32 %v328, %v373
    %v385 = vmul.f32 %v329, %v375
    %v386 = vmul.f32 %v330, %v377
    %v387 = vmul.f32 %v331, %v379
    %388 = vset.pattern.permute.xlu0 1
    %389 = vperm.xlu0 %388, %v57
    %v390 = vpop.permute.xlu0 %389
    %392 = vset.pattern.permute.xlu0 1
    %393 = vperm.xlu0 %392, %v61
    %v394 = vpop.permute.xlu0 %393
    %396 = vset.pattern.permute.xlu0 1
    %397 = vperm.xlu0 %396, %v65
    %v398 = vpop.permute.xlu0 %397
    %400 = vset.pattern.permute.xlu0 1
    %401 = vperm.xlu0 %400, %v69
    %v402 = vpop.permute.xlu0 %401
    %v404 = vmul.f32 %v380, %v390
    %v405 = vmul.f32 %v381, %v390
    %v406 = vmul.f32 %v382, %v394
    %v407 = vmul.f32 %v383, %v394
    %v408 = vmul.f32 %v384, %v398
    %v409 = vmul.f32 %v385, %v398
    %v410 = vmul.f32 %v386, %v402
    %v411 = vmul.f32 %v387, %v402
    %412 = vset.pattern.permute.xlu0 2
    %413 = vperm.xlu0 %412, %v57
    %v414 = vpop.permute.xlu0 %413
    %416 = vset.pattern.permute.xlu0 2
    %417 = vperm.xlu0 %416, %v61
    %v418 = vpop.permute.xlu0 %417
    %420 = vset.pattern.permute.xlu0 2
    %421 = vperm.xlu0 %420, %v65
    %v422 = vpop.permute.xlu0 %421
    %424 = vset.pattern.permute.xlu0 2
    %425 = vperm.xlu0 %424, %v69
    %v426 = vpop.permute.xlu0 %425
    %v428 = vadd.f32 %v404, %v414
    %v429 = vadd.f32 %v405, %v414
    %v430 = vadd.f32 %v406, %v418
    %v431 = vadd.f32 %v407, %v418
    %v432 = vadd.f32 %v408, %v422
    %v433 = vadd.f32 %v409, %v422
    %v434 = vadd.f32 %v410, %v426
    %v435 = vadd.f32 %v411, %v426
    %v436 = vadd.f32 %v428, %v429
    %v437 = vrot.slane %v436, 4
    %v438 = vadd.f32 %v436, %v437
    %v439 = vrot.slane %v438, 2
    %v440 = vadd.f32 %v438, %v439
    %v441 = vrot.slane %v440, 1
    %v442 = vadd.f32 %v440, %v441
    %v443 = vadd.f32 %v430, %v431
    %v444 = vrot.slane %v443, 4
    %v445 = vadd.f32 %v443, %v444
    %v446 = vrot.slane %v445, 2
    %v447 = vadd.f32 %v445, %v446
    %v448 = vrot.slane %v447, 1
    %v449 = vadd.f32 %v447, %v448
    %v450 = vadd.f32 %v432, %v433
    %v451 = vrot.slane %v450, 4
    %v452 = vadd.f32 %v450, %v451
    %v453 = vrot.slane %v452, 2
    %v454 = vadd.f32 %v452, %v453
    %v455 = vrot.slane %v454, 1
    %v456 = vadd.f32 %v454, %v455
    %v457 = vadd.f32 %v434, %v435
    %v458 = vrot.slane %v457, 4
    %v459 = vadd.f32 %v457, %v458
    %v460 = vrot.slane %v459, 2
    %v461 = vadd.f32 %v459, %v460
    %v462 = vrot.slane %v461, 1
    %v463 = vadd.f32 %v461, %v462
    %v464 = vrcp.pop 16.0
    %v465 = vmul.f32 %v442, %v464
    %v466 = vmul.f32 %v449, %v464
    %v467 = vmul.f32 %v456, %v464
    %v468 = vmul.f32 %v463, %v464
    %469 = vset.pattern.permute.xlu0 7
    %470 = vperm.xlu0 %469, %v32
    %v471 = vpop.permute.xlu0 %470
    %v473 = vlaneseq
    %v474 = vshrl.u32 %v473, 7
    %v475 = vsub.s32 0, %v474
    %v476 = vrot.slane %v471, %v475
    %477 = vset.pattern.permute.xlu0 7
    %478 = vperm.xlu0 %477, %v33
    %v479 = vpop.permute.xlu0 %478
    %v481 = vlaneseq
    %v482 = vshrl.u32 %v481, 7
    %v483 = vsub.s32 0, %v482
    %v484 = vrot.slane %v479, %v483
    %485 = vset.pattern.permute.xlu0 7
    %486 = vperm.xlu0 %485, %v34
    %v487 = vpop.permute.xlu0 %486
    %v489 = vlaneseq
    %v490 = vshrl.u32 %v489, 7
    %v491 = vsub.s32 0, %v490
    %v492 = vrot.slane %v487, %v491
    %493 = vset.pattern.permute.xlu0 7
    %494 = vperm.xlu0 %493, %v35
    %v495 = vpop.permute.xlu0 %494
    %v497 = vlaneseq
    %v498 = vshrl.u32 %v497, 7
    %v499 = vsub.s32 0, %v498
    %v500 = vrot.slane %v495, %v499
    %v501 = vmul.f32 %v476, %v40
    %v502 = vmul.f32 %v484, %v40
    %v503 = vmul.f32 %v492, %v40
    %v504 = vmul.f32 %v500, %v40
    %509 = vrot.lane.b32.xlu0 %v465, 1
    %v510 = vpop.permute.xlu0 %509
    %511 = vrot.lane.b32.xlu0 %v466, 1
    %v512 = vpop.permute.xlu0 %511
    %513 = vrot.lane.b32.xlu0 %v467, 1
    %v514 = vpop.permute.xlu0 %513
    %515 = vrot.lane.b32.xlu0 %v468, 1
    %v516 = vpop.permute.xlu0 %515
    %v521 = vmul.f32 %v501, %v510
    %v522 = vmul.f32 %v502, %v512
    %v523 = vmul.f32 %v503, %v514
    %v524 = vmul.f32 %v504, %v516
    %v525 = vadd.f32 %v521, 0.0
    %v526 = vadd.f32 %v522, 0.0
    %v527 = vadd.f32 %v523, 0.0
    %v528 = vadd.f32 %v524, 0.0
    %529 = vset.pattern.permute.xlu0 8
    %530 = vperm.xlu0 %529, %v32
    %v531 = vpop.permute.xlu0 %530
    %v533 = vlaneseq
    %v534 = vshrl.u32 %v533, 7
    %v535 = vsub.s32 0, %v534
    %v536 = vrot.slane %v531, %v535
    %537 = vset.pattern.permute.xlu0 8
    %538 = vperm.xlu0 %537, %v33
    %v539 = vpop.permute.xlu0 %538
    %v541 = vlaneseq
    %v542 = vshrl.u32 %v541, 7
    %v543 = vsub.s32 0, %v542
    %v544 = vrot.slane %v539, %v543
    %545 = vset.pattern.permute.xlu0 8
    %546 = vperm.xlu0 %545, %v34
    %v547 = vpop.permute.xlu0 %546
    %v549 = vlaneseq
    %v550 = vshrl.u32 %v549, 7
    %v551 = vsub.s32 0, %v550
    %v552 = vrot.slane %v547, %v551
    %553 = vset.pattern.permute.xlu0 8
    %554 = vperm.xlu0 %553, %v35
    %v555 = vpop.permute.xlu0 %554
    %v557 = vlaneseq
    %v558 = vshrl.u32 %v557, 7
    %v559 = vsub.s32 0, %v558
    %v560 = vrot.slane %v555, %v559
    %v561 = vmul.f32 %v536, %v465
    %v562 = vmul.f32 %v544, %v466
    %v563 = vmul.f32 %v552, %v467
    %v564 = vmul.f32 %v560, %v468
    %v565 = vadd.f32 %v525, %v561
    %v566 = vadd.f32 %v526, %v562
    %v567 = vadd.f32 %v527, %v563
    %v568 = vadd.f32 %v528, %v564
    %569 = vset.pattern.permute.xlu0 9
    %570 = vperm.xlu0 %569, %v32
    %v571 = vpop.permute.xlu0 %570
    %v573 = vlaneseq
    %v574 = vshrl.u32 %v573, 7
    %v575 = vsub.s32 0, %v574
    %v576 = vrot.slane %v571, %v575
    %577 = vset.pattern.permute.xlu0 9
    %578 = vperm.xlu0 %577, %v33
    %v579 = vpop.permute.xlu0 %578
    %v581 = vlaneseq
    %v582 = vshrl.u32 %v581, 7
    %v583 = vsub.s32 0, %v582
    %v584 = vrot.slane %v579, %v583
    %585 = vset.pattern.permute.xlu0 9
    %586 = vperm.xlu0 %585, %v34
    %v587 = vpop.permute.xlu0 %586
    %v589 = vlaneseq
    %v590 = vshrl.u32 %v589, 7
    %v591 = vsub.s32 0, %v590
    %v592 = vrot.slane %v587, %v591
    %593 = vset.pattern.permute.xlu0 9
    %594 = vperm.xlu0 %593, %v35
    %v595 = vpop.permute.xlu0 %594
    %v597 = vlaneseq
    %v598 = vshrl.u32 %v597, 7
    %v599 = vsub.s32 0, %v598
    %v600 = vrot.slane %v595, %v599
    %v601 = vmul.f32 %v576, %v41
    %v602 = vmul.f32 %v584, %v41
    %v603 = vmul.f32 %v592, %v41
    %v604 = vmul.f32 %v600, %v41
    %605 = vrot.lane.b32.xlu0 %v465, 127
    %v606 = vpop.permute.xlu0 %605
    %607 = vrot.lane.b32.xlu0 %v466, 127
    %v608 = vpop.permute.xlu0 %607
    %609 = vrot.lane.b32.xlu0 %v467, 127
    %v610 = vpop.permute.xlu0 %609
    %611 = vrot.lane.b32.xlu0 %v468, 127
    %v612 = vpop.permute.xlu0 %611
    %v617 = vmul.f32 %v601, %v606
    %v618 = vmul.f32 %v602, %v608
    %v619 = vmul.f32 %v603, %v610
    %v620 = vmul.f32 %v604, %v612
    %v621 = vadd.f32 %v565, %v617
    %v622 = vadd.f32 %v566, %v618
    %v623 = vadd.f32 %v567, %v619
    %v624 = vadd.f32 %v568, %v620
    %v625 = vxor.u32 %v621, 2147483648
    %v626 = vxor.u32 %v622, 2147483648
    %v627 = vxor.u32 %v623, 2147483648
    %v628 = vxor.u32 %v624, 2147483648
    %v629 = vmul.f32 %v625, 1.442695
    %v630 = vpow.pop %v629
    %v631 = vmul.f32 %v626, 1.442695
    %v632 = vpow.pop %v631
    %v633 = vmul.f32 %v627, 1.442695
    %v634 = vpow.pop %v633
    %v635 = vmul.f32 %v628, 1.442695
    %v636 = vpow.pop %v635
    %v637 = vadd.f32 %v630, 1.0
    %v638 = vadd.f32 %v632, 1.0
    %v639 = vadd.f32 %v634, 1.0
    %v640 = vadd.f32 %v636, 1.0
    %v641 = vrcp.pop %v637
    %v642 = vmul.f32 1.0, %v641
    %v643 = vrcp.pop %v638
    %v644 = vmul.f32 1.0, %v643
    %v645 = vrcp.pop %v639
    %v646 = vmul.f32 1.0, %v645
    %v647 = vrcp.pop %v640
    %v648 = vmul.f32 1.0, %v647
    %v649 = vmul.f32 %v621, %v642
    %v650 = vmul.f32 %v622, %v644
    %v651 = vmul.f32 %v623, %v646
    %v652 = vmul.f32 %v624, %v648
    %653 = vset.pattern.permute.xlu0 10
    %654 = vperm.xlu0 %653, %v32
    %v655 = vpop.permute.xlu0 %654
    %v657 = vlaneseq
    %v658 = vshrl.u32 %v657, 7
    %v659 = vsub.s32 0, %v658
    %v660 = vrot.slane %v655, %v659
    %661 = vset.pattern.permute.xlu0 10
    %662 = vperm.xlu0 %661, %v33
    %v663 = vpop.permute.xlu0 %662
    %v665 = vlaneseq
    %v666 = vshrl.u32 %v665, 7
    %v667 = vsub.s32 0, %v666
    %v668 = vrot.slane %v663, %v667
    %669 = vset.pattern.permute.xlu0 10
    %670 = vperm.xlu0 %669, %v34
    %v671 = vpop.permute.xlu0 %670
    %v673 = vlaneseq
    %v674 = vshrl.u32 %v673, 7
    %v675 = vsub.s32 0, %v674
    %v676 = vrot.slane %v671, %v675
    %677 = vset.pattern.permute.xlu0 10
    %678 = vperm.xlu0 %677, %v35
    %v679 = vpop.permute.xlu0 %678
    %v681 = vlaneseq
    %v682 = vshrl.u32 %v681, 7
    %v683 = vsub.s32 0, %v682
    %v684 = vrot.slane %v679, %v683
    %v685 = vmul.f32 %v660, %v649
    %v686 = vmul.f32 %v668, %v649
    %v687 = vmul.f32 %v676, %v649
    %v688 = vmul.f32 %v684, %v649
    %689 = vset.pattern.permute.xlu0 3
    %690 = vperm.xlu0 %689, %v32
    %v691 = vpop.permute.xlu0 %690
    %v693 = vlaneseq
    %v694 = vshrl.u32 %v693, 7
    %v695 = vsub.s32 0, %v694
    %v696 = vrot.slane %v691, %v695
    %697 = vset.pattern.permute.xlu0 3
    %698 = vperm.xlu0 %697, %v33
    %v699 = vpop.permute.xlu0 %698
    %v701 = vlaneseq
    %v702 = vshrl.u32 %v701, 7
    %v703 = vsub.s32 0, %v702
    %v704 = vrot.slane %v699, %v703
    %705 = vset.pattern.permute.xlu0 3
    %706 = vperm.xlu0 %705, %v34
    %v707 = vpop.permute.xlu0 %706
    %v709 = vlaneseq
    %v710 = vshrl.u32 %v709, 7
    %v711 = vsub.s32 0, %v710
    %v712 = vrot.slane %v707, %v711
    %713 = vset.pattern.permute.xlu0 3
    %714 = vperm.xlu0 %713, %v35
    %v715 = vpop.permute.xlu0 %714
    %v717 = vlaneseq
    %v718 = vshrl.u32 %v717, 7
    %v719 = vsub.s32 0, %v718
    %v720 = vrot.slane %v715, %v719
    %v721 = vadd.f32 %v696, %v685
    %v722 = vadd.f32 %v704, %v686
    %v723 = vadd.f32 %v712, %v687
    %v724 = vadd.f32 %v720, %v688
    %725 = vset.pattern.permute.xlu0 11
    %726 = vperm.xlu0 %725, %v32
    %v727 = vpop.permute.xlu0 %726
    %v729 = vlaneseq
    %v730 = vshrl.u32 %v729, 7
    %v731 = vsub.s32 0, %v730
    %v732 = vrot.slane %v727, %v731
    %733 = vset.pattern.permute.xlu0 11
    %734 = vperm.xlu0 %733, %v33
    %v735 = vpop.permute.xlu0 %734
    %v737 = vlaneseq
    %v738 = vshrl.u32 %v737, 7
    %v739 = vsub.s32 0, %v738
    %v740 = vrot.slane %v735, %v739
    %741 = vset.pattern.permute.xlu0 11
    %742 = vperm.xlu0 %741, %v34
    %v743 = vpop.permute.xlu0 %742
    %v745 = vlaneseq
    %v746 = vshrl.u32 %v745, 7
    %v747 = vsub.s32 0, %v746
    %v748 = vrot.slane %v743, %v747
    %749 = vset.pattern.permute.xlu0 11
    %750 = vperm.xlu0 %749, %v35
    %v751 = vpop.permute.xlu0 %750
    %v753 = vlaneseq
    %v754 = vshrl.u32 %v753, 7
    %v755 = vsub.s32 0, %v754
    %v756 = vrot.slane %v751, %v755
    %v757 = vmul.f32 %v732, %v650
    %v758 = vmul.f32 %v740, %v650
    %v759 = vmul.f32 %v748, %v650
    %v760 = vmul.f32 %v756, %v650
    %v761 = vadd.f32 %v721, %v757
    %v762 = vadd.f32 %v722, %v758
    %v763 = vadd.f32 %v723, %v759
    %v764 = vadd.f32 %v724, %v760
    %765 = vset.pattern.permute.xlu0 12
    %766 = vperm.xlu0 %765, %v32
    %v767 = vpop.permute.xlu0 %766
    %v769 = vlaneseq
    %v770 = vshrl.u32 %v769, 7
    %v771 = vsub.s32 0, %v770
    %v772 = vrot.slane %v767, %v771
    %773 = vset.pattern.permute.xlu0 12
    %774 = vperm.xlu0 %773, %v33
    %v775 = vpop.permute.xlu0 %774
    %v777 = vlaneseq
    %v778 = vshrl.u32 %v777, 7
    %v779 = vsub.s32 0, %v778
    %v780 = vrot.slane %v775, %v779
    %781 = vset.pattern.permute.xlu0 12
    %782 = vperm.xlu0 %781, %v34
    %v783 = vpop.permute.xlu0 %782
    %v785 = vlaneseq
    %v786 = vshrl.u32 %v785, 7
    %v787 = vsub.s32 0, %v786
    %v788 = vrot.slane %v783, %v787
    %789 = vset.pattern.permute.xlu0 12
    %790 = vperm.xlu0 %789, %v35
    %v791 = vpop.permute.xlu0 %790
    %v793 = vlaneseq
    %v794 = vshrl.u32 %v793, 7
    %v795 = vsub.s32 0, %v794
    %v796 = vrot.slane %v791, %v795
    %v797 = vmul.f32 %v772, %v651
    %v798 = vmul.f32 %v780, %v651
    %v799 = vmul.f32 %v788, %v651
    %v800 = vmul.f32 %v796, %v651
    %v801 = vadd.f32 %v761, %v797
    %v802 = vadd.f32 %v762, %v798
    %v803 = vadd.f32 %v763, %v799
    %v804 = vadd.f32 %v764, %v800
    %805 = vset.pattern.permute.xlu0 13
    %806 = vperm.xlu0 %805, %v32
    %v807 = vpop.permute.xlu0 %806
    %v809 = vlaneseq
    %v810 = vshrl.u32 %v809, 7
    %v811 = vsub.s32 0, %v810
    %v812 = vrot.slane %v807, %v811
    %813 = vset.pattern.permute.xlu0 13
    %814 = vperm.xlu0 %813, %v33
    %v815 = vpop.permute.xlu0 %814
    %v817 = vlaneseq
    %v818 = vshrl.u32 %v817, 7
    %v819 = vsub.s32 0, %v818
    %v820 = vrot.slane %v815, %v819
    %821 = vset.pattern.permute.xlu0 13
    %822 = vperm.xlu0 %821, %v34
    %v823 = vpop.permute.xlu0 %822
    %v825 = vlaneseq
    %v826 = vshrl.u32 %v825, 7
    %v827 = vsub.s32 0, %v826
    %v828 = vrot.slane %v823, %v827
    %829 = vset.pattern.permute.xlu0 13
    %830 = vperm.xlu0 %829, %v35
    %v831 = vpop.permute.xlu0 %830
    %v833 = vlaneseq
    %v834 = vshrl.u32 %v833, 7
    %v835 = vsub.s32 0, %v834
    %v836 = vrot.slane %v831, %v835
    %v837 = vmul.f32 %v812, %v652
    %v838 = vmul.f32 %v820, %v652
    %v839 = vmul.f32 %v828, %v652
    %v840 = vmul.f32 %v836, %v652
    %v841 = vadd.f32 %v801, %v837
    %v842 = vadd.f32 %v802, %v838
    %v843 = vadd.f32 %v803, %v839
    %v844 = vadd.f32 %v804, %v840
    %v849 = vlaneseq
    %v850 = vshrl.u32 %v849, 7
    %v851 = vsub.s32 0, %v850
    %v852 = vrot.slane %v841, %v851
    %v853 = vlaneseq
    %v854 = vshrl.u32 %v853, 7
    %v855 = vsub.s32 0, %v854
    %v856 = vrot.slane %v842, %v855
    %v857 = vlaneseq
    %v858 = vshrl.u32 %v857, 7
    %v859 = vsub.s32 0, %v858
    %v860 = vrot.slane %v843, %v859
    %v861 = vlaneseq
    %v862 = vshrl.u32 %v861, 7
    %v863 = vsub.s32 0, %v862
    %v864 = vrot.slane %v844, %v863
    %v869 = vadd.f32 %v852, %v428
    %v870 = vadd.f32 %v852, %v429
    %v871 = vadd.f32 %v856, %v430
    %v872 = vadd.f32 %v856, %v431
    %v873 = vadd.f32 %v860, %v432
    %v874 = vadd.f32 %v860, %v433
    %v875 = vadd.f32 %v864, %v434
    %v876 = vadd.f32 %v864, %v435
    %v877 = vadd.f32 %v869, %v42
    %v878 = vadd.f32 %v870, %v43
    %v879 = vadd.f32 %v871, %v44
    %v880 = vadd.f32 %v872, %v45
    %v881 = vadd.f32 %v873, %v46
    %v882 = vadd.f32 %v874, %v47
    %v883 = vadd.f32 %v875, %v48
    %v884 = vadd.f32 %v876, %v49
    %v885 = vmax.f32 %v877, 0.0
    %v886 = vmax.f32 %v878, 0.0
    %v887 = vmax.f32 %v879, 0.0
    %v888 = vmax.f32 %v880, 0.0
    %v889 = vmax.f32 %v881, 0.0
    %v890 = vmax.f32 %v882, 0.0
    %v891 = vmax.f32 %v883, 0.0
    %v892 = vmax.f32 %v884, 0.0
    %893 = vst [vmem:[#allocation5] sm:$0xff] %v885
    %894 = vst [vmem:[#allocation5 + $0x8] sm:$0xff] %v886
    %895 = vst [vmem:[#allocation5 + $0x10] sm:$0xff] %v887
    %896 = vst [vmem:[#allocation5 + $0x18] sm:$0xff] %v888
    %897 = vst [vmem:[#allocation5 + $0x20] sm:$0xff] %v889
    %898 = vst [vmem:[#allocation5 + $0x28] sm:$0xff] %v890
    %899 = vst [vmem:[#allocation5 + $0x30] sm:$0xff] %v891
    %900 = vst [vmem:[#allocation5 + $0x38] sm:$0xff] %v892
    // Predicated region
    $region22: #{tpu_custom_call.1} parent=1 // pred_check
      _
    $region23: #{tpu_custom_call.1} parent=1 // pred_check_branch
      %902 = sbr.rel (0) target = $region25
    $region24: #{tpu_custom_call.1} parent=1 // pred_region
      %s904 = ssub.s32 1024, 1024
      %905 = vsyncadd [#allocation4], %s904
      %s906 = sshll.u32 [#allocation5], 4
      %s907 = int_to_ptr.vmem [resolvable:$true] %s906
      %912 = dma.vmem_to_hbm [thread:$0]  %s907, 1024, %s4, [#allocation4], 128, 128, 8
    $region25: #{tpu_custom_call.1} parent=1 // pred_fallthru
      _
    // Predicated region
    $region26: #{tpu_custom_call.1} parent=1 // pred_check
      _
    $region27: #{tpu_custom_call.1} parent=1 // pred_check_branch
      %914 = sbr.rel (0) target = $region29
    $region28: #{tpu_custom_call.1} parent=1 // pred_region
      %915 = dma.done [#allocation4], 1024
    $region29: #{tpu_custom_call.1} parent=1 // pred_fallthru
      _
    %916 = vsyncpa [#allocation3], 1
    %917 = vsyncpa [#allocation4], 1

</llo_original>
